<compile_context>
chip_gen: v6e
topology: v6e:2x2x1
jax: 0.10.0
libtpu: 0.0.40
codegen_flags: <defaults>
</compile_context>

<pallas_src>
import jax
import jax.numpy as jnp
import numpy as np
from jax.experimental import pallas as pl
from jax.experimental.pallas import tpu as pltpu


# --------------------------------------------------------------------------
# Fused forward: one pallas_call, one matmul
# --------------------------------------------------------------------------
def simple_mamba_block(x, params, state=None):
    B, T, C, H, W = x.shape
    S = params["state_update_w"].shape[0]          # d_state
    HW = H * W
    R = B * T * C                                   # data rows (sublane axis)
    Q = B * S                                       # new-state rows

    f32 = jnp.float32
    if state is None:
        state = jnp.zeros((B, S), f32)
    state = state.astype(f32)

    # ---- wrapper-side weight folding (tiny; static given params) ------------
    Wt  = params["temporal_proj_w"][:, :, :, 0, 0].astype(f32)   # (C, C, 3)
    Ws  = params["spatial_proj_w"][:, :, 0, 0].astype(f32)       # (C, C)
    Wsp = params["state_proj_w"].astype(f32)                     # (C, S)
    bsp = params["state_proj_b"].astype(f32)                     # (C,)
    Wu  = params["state_update_w"].astype(f32)                   # (S, C)
    bu  = params["state_update_b"].astype(f32)                   # (S,)
    bt  = params["temporal_proj_b"].astype(f32)                  # (C,)
    bs  = params["spatial_proj_b"].astype(f32)                   # (C,)

    # fused (spatial o temporal) conv weight per tap: Wf_k = Ws @ Wt[..., k]
    wf = jnp.einsum("om,mik->oik", Ws, Wt)                       # (C, C, 3)

    # per-batch block, block-tridiagonal in time: rows (t,co), cols (t',ci)
    w_blk = sum(jnp.kron(jnp.eye(T, k=k - 1, dtype=f32), wf[:, :, k])
                for k in range(3))                               # (T*C, T*C)

    # state-update rows: sum over t (with the 1/T of the time-mean folded in)
    # of Wu applied over channels; the 1/(H*W) mean happens in-kernel on lanes.
    w_upd = (jnp.tile(Wu, (1, T)) / T) @ w_blk                   # (S, T*C)

    eye_b = jnp.eye(B, dtype=f32)
    w_big = jnp.concatenate([jnp.kron(eye_b, w_blk),             # (R, R)
                             jnp.kron(eye_b, w_upd)], axis=0)    # (R+Q, R)

    # per-row bias ((b,t,c) rows): Ws@bt + bs + state_proj(state)
    const_bias = Ws @ bt + bs + bsp                              # (C,)
    bias_bc = state @ Wsp.T + const_bias[None, :]                # (B, C)
    bias_col = jnp.tile(bias_bc[:, None, :], (1, T, 1)).reshape(R, 1)
    # constant part of new_state: Wu @ bias + bu, per (b, s)
    nsc_col = (bias_bc @ Wu.T + bu[None, :]).reshape(Q, 1)

    # FREE reshape of the contiguous (B,T,C,H,W) buffer -> rows=(b,t,c), lanes=hw
    x2d = x.astype(f32).reshape(R, HW)

    def kernel(x_ref, w_ref, b_ref, nsc_ref, out_ref, ns_ref):
        # One fused matmul: (R+Q, R) @ (R, HW).
        y = jnp.dot(w_ref[...], x_ref[...], preferred_element_type=jnp.float32)
        # rows 0:R  -> combined output (+ per-(b,c) bias column, broadcast on lanes)
        out_ref[...] = y[:R, :] + b_ref[...]
        # rows R:   -> new_state = lane-mean (1/HW) + precomputed constant
        ns_ref[...] = jnp.mean(y[R:, :], axis=1, keepdims=True) + nsc_ref[...]

    out2d, ns = pl.pallas_call(
        kernel,
        grid=(1,),                                   # single step: batch folded in
        in_specs=[
            pl.BlockSpec((R, HW), lambda i: (0, 0)),         # x          (64, 64)
            pl.BlockSpec((R + Q, R), lambda i: (0, 0)),      # fused W    (96, 64)
            pl.BlockSpec((R, 1), lambda i: (0, 0)),          # bias col   (64, 1)
            pl.BlockSpec((Q, 1), lambda i: (0, 0)),          # ns const   (32, 1)
        ],
        out_specs=(pl.BlockSpec((R, HW), lambda i: (0, 0)),  # output     (64, 64)
                   pl.BlockSpec((Q, 1), lambda i: (0, 0))),  # new_state  (32, 1)
        out_shape=(jax.ShapeDtypeStruct((R, HW), f32),
                   jax.ShapeDtypeStruct((Q, 1), f32)),
    )(x2d, w_big, bias_col, nsc_col)

    # FREE reshapes back to the PyTorch layouts (no transposes anywhere).
    output = out2d.reshape(B, T, C, H, W)
    new_state = ns.reshape(B, S)
    return output, new_state


# --------------------------------------------------------------------------
# Pure-JAX reference (mirrors the PyTorch forward) for verification
# --------------------------------------------------------------------------
def reference_forward(x, params, state):
    B, T, C, H, W = x.shape
    sf = state @ params["state_proj_w"].T + params["state_proj_b"]   # (B, C)
    Wt = params["temporal_proj_w"][:, :, :, 0, 0]                    # (Co, Ci, 3)
    x_cl = jnp.transpose(x, (0, 1, 3, 4, 2))                         # (B,T,H,W,Ci)
    x_p = jnp.pad(x_cl, ((0, 0), (1, 1), (0, 0), (0, 0), (0, 0)))
    temp = sum(jnp.einsum("bthwc,dc->bthwd", x_p[:, k:k + T], Wt[:, :, k])
               for k in range(3)) + params["temporal_proj_b"]
    Ws = params["spatial_proj_w"][:, :, 0, 0]
    spat = jnp.einsum("bthwc,dc->bthwd", temp, Ws) + params["spatial_proj_b"]
    out_cl = spat + sf[:, None, None, None, :]
    output = jnp.transpose(out_cl, (0, 1, 4, 2, 3))                  # (B,T,C,H,W)
    pooled = output.mean(axis=(-2, -1))                              # (B, T, C)
    fm = pooled.mean(axis=1)                                         # (B, C)
    new_state = fm @ params["state_update_w"].T + params["state_update_b"]
    return output, new_state


def init_params(key, d_model, d_state):
    ks = jax.random.split(key, 8)
    s = 0.1
    return {
        "spatial_proj_w": jax.random.normal(ks[0], (d_model, d_model, 1, 1), jnp.float32) * s,
        "spatial_proj_b": jax.random.normal(ks[1], (d_model,), jnp.float32) * s,
        "temporal_proj_w": jax.random.normal(ks[2], (d_model, d_model, 3, 1, 1), jnp.float32) * s,
        "temporal_proj_b": jax.random.normal(ks[3], (d_model,), jnp.float32) * s,
        "state_proj_w": jax.random.normal(ks[4], (d_model, d_state), jnp.float32) * s,
        "state_proj_b": jax.random.normal(ks[5], (d_model,), jnp.float32) * s,
        "state_update_w": jax.random.normal(ks[6], (d_state, d_model), jnp.float32) * s,
        "state_update_b": jax.random.normal(ks[7], (d_state,), jnp.float32) * s,
    }


if __name__ == "__main__":
    key = jax.random.PRNGKey(0)
    kx, kp = jax.random.split(key)

    B, T, C, H, W = 2, 4, 8, 8, 8     # d_model = C = 8
    d_state = 16

    x = jax.random.normal(kx, (B, T, C, H, W), jnp.float32)
    params = init_params(kp, C, d_state)

    fwd = jax.jit(simple_mamba_block)
    output, new_state = fwd(x, params)
    jax.block_until_ready((output, new_state))

    ref_out, ref_state = reference_forward(
        x, params, jnp.zeros((B, d_state), jnp.float32))

    assert output.shape == (B, T, C, H, W)
    assert new_state.shape == (B, d_state)
    np.testing.assert_allclose(np.asarray(output), np.asarray(ref_out),
                               rtol=1e-4, atol=1e-5)
    np.testing.assert_allclose(np.asarray(new_state), np.asarray(ref_state),
                               rtol=1e-4, atol=1e-5)
    print("KERNEL_OK")
</pallas_src>

<mosaic_0001>
module attributes {stable_mosaic.version = 11 : i64} {
  func.func @kernel(%arg0: i32, %arg1: memref<64x64xf32, #tpu.memory_space<vmem>>, %arg2: memref<96x64xf32, #tpu.memory_space<vmem>>, %arg3: memref<64x1xf32, #tpu.memory_space<vmem>>, %arg4: memref<32x1xf32, #tpu.memory_space<vmem>>, %arg5: memref<64x64xf32, #tpu.memory_space<vmem>>, %arg6: memref<32x1xf32, #tpu.memory_space<vmem>>) attributes {dimension_semantics = [#tpu.dimension_semantics<arbitrary>], iteration_bounds = array<i64: 1>, scalar_prefetch = 0 : i64, scratch_operands = 0 : i64, tpu.core_type = #tpu.core_type<tc>, window_params = [{pipeline_mode = #tpu.pipeline_mode<synchronous>, transform_indices = @transform_0, window_bounds = array<i64: 64, 64>}, {pipeline_mode = #tpu.pipeline_mode<synchronous>, transform_indices = @transform_1, window_bounds = array<i64: 96, 64>}, {pipeline_mode = #tpu.pipeline_mode<synchronous>, transform_indices = @transform_2, window_bounds = array<i64: 64, 1>}, {pipeline_mode = #tpu.pipeline_mode<synchronous>, transform_indices = @transform_3, window_bounds = array<i64: 32, 1>}, {pipeline_mode = #tpu.pipeline_mode<synchronous>, transform_indices = @transform_4, window_bounds = array<i64: 64, 64>}, {pipeline_mode = #tpu.pipeline_mode<synchronous>, transform_indices = @transform_5, window_bounds = array<i64: 32, 1>}]} {
    %c0 = arith.constant 0 : index
    %c0_0 = arith.constant 0 : index
    %0 = vector.load %arg2[%c0, %c0_0] : memref<96x64xf32, #tpu.memory_space<vmem>>, vector<96x64xf32>
    %c0_1 = arith.constant 0 : index
    %c0_2 = arith.constant 0 : index
    %1 = vector.load %arg1[%c0_1, %c0_2] : memref<64x64xf32, #tpu.memory_space<vmem>>, vector<64x64xf32>
    %cst = arith.constant dense<0.000000e+00> : vector<96x64xf32>
    %2 = tpu.matmul %0, %1, %cst {dimension_numbers = #tpu.dot_dimension_numbers<[1], [0], [0], [1], [0, 0, 1, 1], [], []>} : vector<96x64xf32>, vector<64x64xf32>, vector<96x64xf32> -> vector<96x64xf32>
    %3 = vector.extract_strided_slice %2 {offsets = [0, 0], sizes = [64, 64], strides = [1, 1]} : vector<96x64xf32> to vector<64x64xf32>
    %c0_3 = arith.constant 0 : index
    %c0_4 = arith.constant 0 : index
    %4 = vector.load %arg3[%c0_3, %c0_4] : memref<64x1xf32, #tpu.memory_space<vmem>>, vector<64x1xf32>
    %5 = vector.broadcast %4 : vector<64x1xf32> to vector<64x64xf32>
    %6 = arith.addf %3, %5 : vector<64x64xf32>
    %c0_5 = arith.constant 0 : index
    %c0_6 = arith.constant 0 : index
    %7 = vector.load %arg5[%c0_5, %c0_6] : memref<64x64xf32, #tpu.memory_space<vmem>>, vector<64x64xf32>
    tpu.vector_store %arg5[%c0_5, %c0_6], %6 {strides = array<i32>} : memref<64x64xf32, #tpu.memory_space<vmem>>, vector<64x64xf32>,
    %8 = vector.extract_strided_slice %2 {offsets = [64, 0], sizes = [32, 64], strides = [1, 1]} : vector<96x64xf32> to vector<32x64xf32>
    %cst_7 = arith.constant dense<0.000000e+00> : vector<32xf32>
    %9 = vector.multi_reduction <add>, %8, %cst_7 [1] : vector<32x64xf32> to vector<32xf32>
    %10 = vector.shape_cast %9 : vector<32xf32> to vector<32x1xf32>
    %cst_8 = arith.constant 6.400000e+01 : f32
    %11 = vector.broadcast %cst_8 : f32 to vector<32x1xf32>
    %12 = arith.divf %10, %11 : vector<32x1xf32>
    %c0_9 = arith.constant 0 : index
    %c0_10 = arith.constant 0 : index
    %13 = vector.load %arg4[%c0_9, %c0_10] : memref<32x1xf32, #tpu.memory_space<vmem>>, vector<32x1xf32>
    %14 = arith.addf %12, %13 : vector<32x1xf32>
    %c0_11 = arith.constant 0 : index
    %c0_12 = arith.constant 0 : index
    %15 = vector.load %arg6[%c0_11, %c0_12] : memref<32x1xf32, #tpu.memory_space<vmem>>, vector<32x1xf32>
    tpu.vector_store %arg6[%c0_11, %c0_12], %14 {strides = array<i32>} : memref<32x1xf32, #tpu.memory_space<vmem>>, vector<32x1xf32>,
    return
  }
  func.func @transform_0(%arg0: i32) -> (i32, i32) {
    %c0_i32 = arith.constant 0 : i32
    %c0_i32_0 = arith.constant 0 : i32
    %c0_i32_1 = arith.constant 0 : i32
    return %c0_i32, %c0_i32_0 : i32, i32
  }
  func.func @transform_1(%arg0: i32) -> (i32, i32) {
    %c0_i32 = arith.constant 0 : i32
    %c0_i32_0 = arith.constant 0 : i32
    %c0_i32_1 = arith.constant 0 : i32
    return %c0_i32, %c0_i32_0 : i32, i32
  }
  func.func @transform_2(%arg0: i32) -> (i32, i32) {
    %c0_i32 = arith.constant 0 : i32
    %c0_i32_0 = arith.constant 0 : i32
    %c0_i32_1 = arith.constant 0 : i32
    return %c0_i32, %c0_i32_0 : i32, i32
  }
  func.func @transform_3(%arg0: i32) -> (i32, i32) {
    %c0_i32 = arith.constant 0 : i32
    %c0_i32_0 = arith.constant 0 : i32
    %c0_i32_1 = arith.constant 0 : i32
    return %c0_i32, %c0_i32_0 : i32, i32
  }
  func.func @transform_4(%arg0: i32) -> (i32, i32) {
    %c0_i32 = arith.constant 0 : i32
    %c0_i32_0 = arith.constant 0 : i32
    %c0_i32_1 = arith.constant 0 : i32
    return %c0_i32, %c0_i32_0 : i32, i32
  }
  func.func @transform_5(%arg0: i32) -> (i32, i32) {
    %c0_i32 = arith.constant 0 : i32
    %c0_i32_0 = arith.constant 0 : i32
    %c0_i32_1 = arith.constant 0 : i32
    return %c0_i32, %c0_i32_0 : i32, i32
  }
}

</mosaic_0001>

<llo_original>
// kernel: simple_mamba_block.1
$region0: #{simple_mamba_block.1}
  #allocation0 [shape = 'u32[]', space=smem, size = 0x4, offset = 0x4, fixed_abs, tag = 'smem constant byte address 0x4 - core index']
  #allocation1 [shape = 'u32[144,128]{1,0:T(1,128)}', space=vmem, size = 0x12000, scoped, tag = 'internal scratch']
  %s0 = inlined_call_operand.vmem [shape: f32[64,64], index: 0, kind: input, shape index: {}]
  %s1 = inlined_call_operand.vmem [shape: f32[96,64], index: 1, kind: input, shape index: {}]
  %s2 = inlined_call_operand.vmem [shape: f32[64,1], index: 2, kind: input, shape index: {}]
  %s3 = inlined_call_operand.vmem [shape: f32[32,1], index: 3, kind: input, shape index: {}]
  %s4 = inlined_call_operand.vmem [shape: f32[64,64], index: 4, kind: output, shape index: {0}]
  %s5 = inlined_call_operand.vmem [shape: f32[32,1], index: 5, kind: output, shape index: {1}]
  %6 = xla_tuple %s4, %s5
  %s7 = sld [smem:[#allocation0]]
  $region34: #{simple_mamba_block.1} parent=0
    _
  %s9 = ssub.s32 1, %s7
  %s10 = scalar_select 0, %s9, %s7
  // Predicated region
  $region2: #{simple_mamba_block.1} parent=0 // pred_check
    _
  $region3: #{simple_mamba_block.1} parent=0 // pred_check_branch
    %12 = sbr.rel (0) target = $region5
  $region4: #{simple_mamba_block.1} parent=0 // pred_region
    _
  $region5: #{simple_mamba_block.1} parent=0 // pred_fallthru
    _
  // Predicated region
  $region6: #{simple_mamba_block.1} parent=0 // pred_check
    _
  $region7: #{simple_mamba_block.1} parent=0 // pred_check_branch
    %14 = sbr.rel (0) target = $region9
  $region8: #{simple_mamba_block.1} parent=0 // pred_region
    _
  $region9: #{simple_mamba_block.1} parent=0 // pred_fallthru
    _
  // Predicated region
  $region10: #{simple_mamba_block.1} parent=0 // pred_check
    _
  $region11: #{simple_mamba_block.1} parent=0 // pred_check_branch
    %16 = sbr.rel (0) target = $region13
  $region12: #{simple_mamba_block.1} parent=0 // pred_region
    _
  $region13: #{simple_mamba_block.1} parent=0 // pred_fallthru
    _
  // Predicated region
  $region14: #{simple_mamba_block.1} parent=0 // pred_check
    _
  $region15: #{simple_mamba_block.1} parent=0 // pred_check_branch
    %18 = sbr.rel (0) target = $region17
  $region16: #{simple_mamba_block.1} parent=0 // pred_region
    _
  $region17: #{simple_mamba_block.1} parent=0 // pred_fallthru
    _
  %v19 = vld [vmem:[%s1] sm:$0xff]
  %v20 = vld [vmem:[%s1 + $0x8] sm:$0xff]
  %v21 = vld [vmem:[%s1 + $0x10] sm:$0xff]
  %v22 = vld [vmem:[%s1 + $0x18] sm:$0xff]
  %v23 = vld [vmem:[%s1 + $0x20] sm:$0xff]
  %v24 = vld [vmem:[%s1 + $0x28] sm:$0xff]
  %v25 = vld [vmem:[%s1 + $0x30] sm:$0xff]
  %v26 = vld [vmem:[%s1 + $0x38] sm:$0xff]
  %v27 = vld [vmem:[%s1 + $0x40] sm:$0xff]
  %v28 = vld [vmem:[%s1 + $0x48] sm:$0xff]
  %v29 = vld [vmem:[%s1 + $0x50] sm:$0xff]
  %v30 = vld [vmem:[%s1 + $0x58] sm:$0xff]
  %v31 = vld [vmem:[%s0] sm:$0xff]
  %v32 = vld [vmem:[%s0 + $0x8] sm:$0xff]
  %v33 = vld [vmem:[%s0 + $0x10] sm:$0xff]
  %v34 = vld [vmem:[%s0 + $0x18] sm:$0xff]
  %v35 = vld [vmem:[%s0 + $0x20] sm:$0xff]
  %v36 = vld [vmem:[%s0 + $0x28] sm:$0xff]
  %v37 = vld [vmem:[%s0 + $0x30] sm:$0xff]
  %v38 = vld [vmem:[%s0 + $0x38] sm:$0xff]
  %vm39 = vcmask 523264
  %v41 = vsel %vm39, %v19, 0
  %v44 = vsel %vm39, %v20, 0
  %v47 = vsel %vm39, %v21, 0
  %v50 = vsel %vm39, %v22, 0
  %v53 = vsel %vm39, %v23, 0
  %v56 = vsel %vm39, %v24, 0
  %v59 = vsel %vm39, %v25, 0
  %v62 = vsel %vm39, %v26, 0
  %v65 = vsel %vm39, %v27, 0
  %v68 = vsel %vm39, %v28, 0
  %v71 = vsel %vm39, %v29, 0
  %v74 = vsel %vm39, %v30, 0
  %76 = vmatprep.subr.mxu0 0.0
  %77 = vmatpush1.msra.mxu0 0.0
  %78 = vmatprep.subr.mxu0 0.0
  %79 = vmatpush1.msra.mxu0 0.0
  %80 = vmatprep.subr.mxu0 0.0
  %81 = vmatpush1.msra.mxu0 0.0
  %82 = vmatprep.subr.mxu0 0.0
  %83 = vmatpush1.msra.mxu0 0.0
  %84 = vmatprep.subr.mxu0 0.0
  %85 = vmatpush1.msra.mxu0 0.0
  %86 = vmatprep.subr.mxu0 0.0
  %87 = vmatpush1.msra.mxu0 0.0
  %88 = vmatprep.subr.mxu0 0.0
  %89 = vmatpush1.msra.mxu0 0.0
  %90 = vmatprep.subr.mxu0 0.0
  %91 = vmatpush1.msra.mxu0 0.0
  %92 = vmatprep.subr.mxu0 0.0
  %93 = vmatpush1.msra.mxu0 %v38
  %94 = vmatprep.subr.mxu0 0.0
  %95 = vmatpush1.msra.mxu0 %v37
  %96 = vmatprep.subr.mxu0 0.0
  %97 = vmatpush1.msra.mxu0 %v36
  %98 = vmatprep.subr.mxu0 0.0
  %99 = vmatpush1.msra.mxu0 %v35
  %100 = vmatprep.subr.mxu0 0.0
  %101 = vmatpush1.msra.mxu0 %v34
  %102 = vmatprep.subr.mxu0 0.0
  %103 = vmatpush1.msra.mxu0 %v33
  %104 = vmatprep.subr.mxu0 0.0
  %105 = vmatpush1.msra.mxu0 %v32
  %106 = vmatprep.subr.mxu0 0.0
  %107 = vmatpush1.msra.mxu0 %v31
  %108 = vmatprep.subr.mxu0 0.0
  %109 = vmatpush2.msra.mxu0 0.0
  %110 = vmatprep.subr.mxu0 0.0
  %111 = vmatpush2.msra.mxu0 0.0
  %112 = vmatprep.subr.mxu0 0.0
  %113 = vmatpush2.msra.mxu0 0.0
  %114 = vmatprep.subr.mxu0 0.0
  %115 = vmatpush2.msra.mxu0 0.0
  %116 = vmatprep.subr.mxu0 0.0
  %117 = vmatpush2.msra.mxu0 0.0
  %118 = vmatprep.subr.mxu0 0.0
  %119 = vmatpush2.msra.mxu0 0.0
  %120 = vmatprep.subr.mxu0 0.0
  %121 = vmatpush2.msra.mxu0 0.0
  %122 = vmatprep.subr.mxu0 0.0
  %123 = vmatpush2.msra.mxu0 0.0
  %124 = vmatprep.subr.mxu0 0.0
  %125 = vmatpush2.msra.mxu0 0.0
  %126 = vmatprep.subr.mxu0 0.0
  %127 = vmatpush2.msra.mxu0 0.0
  %128 = vmatprep.subr.mxu0 0.0
  %129 = vmatpush2.msra.mxu0 0.0
  %130 = vmatprep.subr.mxu0 0.0
  %131 = vmatpush2.msra.mxu0 0.0
  %132 = vmatprep.subr.mxu0 0.0
  %133 = vmatpush2.msra.mxu0 0.0
  %134 = vmatprep.subr.mxu0 0.0
  %135 = vmatpush2.msra.mxu0 0.0
  %136 = vmatprep.subr.mxu0 0.0
  %137 = vmatpush2.msra.mxu0 0.0
  %138 = vmatprep.subr.mxu0 0.0
  %139 = vmatpush2.msra.mxu0 0.0
  %140 = vmatprep.mubr.f32.mxu0 0.0
  %141 = vmatmul.mubr.f32.gmra.mxu0 %v41
  %v142 = vpop.f32.mrf.mxu0
  %v143 = vadd.f32 0.0, %v142
  %v144 = vpop.f32.mrf.mxu0
  %145 = vmatprep.mubr.f32.mxu0 0.0
  %146 = vmatmul.mubr.f32.gmra.mxu0 %v44
  %v147 = vpop.f32.mrf.mxu0
  %v148 = vadd.f32 0.0, %v147
  %v149 = vpop.f32.mrf.mxu0
  %150 = vmatprep.mubr.f32.mxu0 0.0
  %151 = vmatmul.mubr.f32.gmra.mxu0 %v47
  %v152 = vpop.f32.mrf.mxu0
  %v153 = vadd.f32 0.0, %v152
  %v154 = vpop.f32.mrf.mxu0
  %155 = vmatprep.mubr.f32.mxu0 0.0
  %156 = vmatmul.mubr.f32.gmra.mxu0 %v50
  %v157 = vpop.f32.mrf.mxu0
  %v158 = vadd.f32 0.0, %v157
  %v159 = vpop.f32.mrf.mxu0
  %160 = vmatprep.mubr.f32.mxu0 0.0
  %161 = vmatmul.mubr.f32.gmra.mxu0 %v53
  %v162 = vpop.f32.mrf.mxu0
  %v163 = vadd.f32 0.0, %v162
  %v164 = vpop.f32.mrf.mxu0
  %165 = vmatprep.mubr.f32.mxu0 0.0
  %166 = vmatmul.mubr.f32.gmra.mxu0 %v56
  %v167 = vpop.f32.mrf.mxu0
  %v168 = vadd.f32 0.0, %v167
  %v169 = vpop.f32.mrf.mxu0
  %170 = vmatprep.mubr.f32.mxu0 0.0
  %171 = vmatmul.mubr.f32.gmra.mxu0 %v59
  %v172 = vpop.f32.mrf.mxu0
  %v173 = vadd.f32 0.0, %v172
  %v174 = vpop.f32.mrf.mxu0
  %175 = vmatprep.mubr.f32.mxu0 0.0
  %176 = vmatmul.mubr.f32.gmra.mxu0 %v62
  %v177 = vpop.f32.mrf.mxu0
  %v178 = vadd.f32 0.0, %v177
  %v179 = vpop.f32.mrf.mxu0
  %180 = vmatprep.mubr.f32.mxu0 0.0
  %181 = vmatmul.mubr.f32.gmra.mxu0 %v65
  %v182 = vpop.f32.mrf.mxu0
  %v183 = vadd.f32 0.0, %v182
  %v184 = vpop.f32.mrf.mxu0
  %185 = vmatprep.mubr.f32.mxu0 0.0
  %186 = vmatmul.mubr.f32.gmra.mxu0 %v68
  %v187 = vpop.f32.mrf.mxu0
  %v188 = vadd.f32 0.0, %v187
  %v189 = vpop.f32.mrf.mxu0
  %190 = vmatprep.mubr.f32.mxu0 0.0
  %191 = vmatmul.mubr.f32.gmra.mxu0 %v71
  %v192 = vpop.f32.mrf.mxu0
  %v193 = vadd.f32 0.0, %v192
  %v194 = vpop.f32.mrf.mxu0
  %195 = vmatprep.mubr.f32.mxu0 0.0
  %196 = vmatmul.mubr.f32.gmra.mxu0 %v74
  %v197 = vpop.f32.mrf.mxu0
  %v198 = vadd.f32 0.0, %v197
  %v199 = vpop.f32.mrf.mxu0
  %200 = vdwg.mxu0
  %v201 = vld [vmem:[%s2] sm:$0xff]
  %v202 = vld [vmem:[%s2 + $0x8] sm:$0xff]
  %v203 = vld [vmem:[%s2 + $0x10] sm:$0xff]
  %v204 = vld [vmem:[%s2 + $0x18] sm:$0xff]
  %v205 = vld [vmem:[%s2 + $0x20] sm:$0xff]
  %v206 = vld [vmem:[%s2 + $0x28] sm:$0xff]
  %v207 = vld [vmem:[%s2 + $0x30] sm:$0xff]
  %v208 = vld [vmem:[%s2 + $0x38] sm:$0xff]
  %210 = vset.pattern.permute.xlu0 0
  %211 = vperm.xlu0 %210, %v201
  %v212 = vpop.permute.xlu0 %211
  %215 = vset.pattern.permute.xlu0 0
  %216 = vperm.xlu0 %215, %v202
  %v217 = vpop.permute.xlu0 %216
  %220 = vset.pattern.permute.xlu0 0
  %221 = vperm.xlu0 %220, %v203
  %v222 = vpop.permute.xlu0 %221
  %225 = vset.pattern.permute.xlu0 0
  %226 = vperm.xlu0 %225, %v204
  %v227 = vpop.permute.xlu0 %226
  %230 = vset.pattern.permute.xlu0 0
  %231 = vperm.xlu0 %230, %v205
  %v232 = vpop.permute.xlu0 %231
  %235 = vset.pattern.permute.xlu0 0
  %236 = vperm.xlu0 %235, %v206
  %v237 = vpop.permute.xlu0 %236
  %240 = vset.pattern.permute.xlu0 0
  %241 = vperm.xlu0 %240, %v207
  %v242 = vpop.permute.xlu0 %241
  %245 = vset.pattern.permute.xlu0 0
  %246 = vperm.xlu0 %245, %v208
  %v247 = vpop.permute.xlu0 %246
  %v249 = vadd.f32 %v143, %v212
  %v250 = vadd.f32 %v148, %v217
  %v251 = vadd.f32 %v153, %v222
  %v252 = vadd.f32 %v158, %v227
  %v253 = vadd.f32 %v163, %v232
  %v254 = vadd.f32 %v168, %v237
  %v255 = vadd.f32 %v173, %v242
  %v256 = vadd.f32 %v178, %v247
  %257 = vst.msk [vmem:[%s4] sm:$0xff] %vm39, %v249
  %258 = vst.msk [vmem:[%s4 + $0x8] sm:$0xff] %vm39, %v250
  %259 = vst.msk [vmem:[%s4 + $0x10] sm:$0xff] %vm39, %v251
  %260 = vst.msk [vmem:[%s4 + $0x18] sm:$0xff] %vm39, %v252
  %261 = vst.msk [vmem:[%s4 + $0x20] sm:$0xff] %vm39, %v253
  %262 = vst.msk [vmem:[%s4 + $0x28] sm:$0xff] %vm39, %v254
  %263 = vst.msk [vmem:[%s4 + $0x30] sm:$0xff] %vm39, %v255
  %264 = vst.msk [vmem:[%s4 + $0x38] sm:$0xff] %vm39, %v256
  %v265 = vsel %vm39, %v183, 0.0
  %266 = vadd.xlane.f32.xlu0 %v265
  %v267 = vpop.xlane.xlu0 %266
  %v268 = vsel %vm39, %v188, 0.0
  %269 = vadd.xlane.f32.xlu0 %v268
  %v270 = vpop.xlane.xlu0 %269
  %v271 = vsel %vm39, %v193, 0.0
  %272 = vadd.xlane.f32.xlu0 %v271
  %v273 = vpop.xlane.xlu0 %272
  %v274 = vsel %vm39, %v198, 0.0
  %275 = vadd.xlane.f32.xlu0 %v274
  %v276 = vpop.xlane.xlu0 %275
  %v277 = vrcp.pop 64.0
  %v278 = vmul.f32 %v267, %v277
  %v279 = vmul.f32 %v270, %v277
  %v280 = vmul.f32 %v273, %v277
  %v281 = vmul.f32 %v276, %v277
  %v282 = vld [vmem:[%s3] sm:$0xff]
  %v283 = vld [vmem:[%s3 + $0x8] sm:$0xff]
  %v284 = vld [vmem:[%s3 + $0x10] sm:$0xff]
  %v285 = vld [vmem:[%s3 + $0x18] sm:$0xff]
  %v286 = vadd.f32 %v278, %v282
  %v287 = vadd.f32 %v279, %v283
  %v288 = vadd.f32 %v280, %v284
  %v289 = vadd.f32 %v281, %v285
  %vm290 = vcmask 7168
  %291 = vst.msk [vmem:[%s5] sm:$0xff] %vm290, %v286
  %292 = vst.msk [vmem:[%s5 + $0x8] sm:$0xff] %vm290, %v287
  %293 = vst.msk [vmem:[%s5 + $0x10] sm:$0xff] %vm290, %v288
  %294 = vst.msk [vmem:[%s5 + $0x18] sm:$0xff] %vm290, %v289
  // Predicated region
  $region18: #{simple_mamba_block.1} parent=0 // pred_check
    _
  $region19: #{simple_mamba_block.1} parent=0 // pred_check_branch
    %296 = sbr.rel (0) target = $region21
  $region20: #{simple_mamba_block.1} parent=0 // pred_region
    _
  $region21: #{simple_mamba_block.1} parent=0 // pred_fallthru
    _
  // Predicated region
  $region22: #{simple_mamba_block.1} parent=0 // pred_check
    _
  $region23: #{simple_mamba_block.1} parent=0 // pred_check_branch
    %298 = sbr.rel (0) target = $region25
  $region24: #{simple_mamba_block.1} parent=0 // pred_region
    _
  $region25: #{simple_mamba_block.1} parent=0 // pred_fallthru
    _
  // Predicated region
  $region26: #{simple_mamba_block.1} parent=0 // pred_check
    _
  $region27: #{simple_mamba_block.1} parent=0 // pred_check_branch
    %300 = sbr.rel (0) target = $region29
  $region28: #{simple_mamba_block.1} parent=0 // pred_region
    _
  $region29: #{simple_mamba_block.1} parent=0 // pred_fallthru
    _
  // Predicated region
  $region30: #{simple_mamba_block.1} parent=0 // pred_check
    _
  $region31: #{simple_mamba_block.1} parent=0 // pred_check_branch
    %302 = sbr.rel (0) target = $region33
  $region32: #{simple_mamba_block.1} parent=0 // pred_region
    _
  $region33: #{simple_mamba_block.1} parent=0 // pred_fallthru
    _

</llo_original>
